<compile_context>
chip_gen: v7x
topology: tpu7x:2x2x1
jax: 0.10.0
libtpu: 0.0.40
codegen_flags: <defaults>
</compile_context>

<pallas_src>
import functools

import jax
import jax.numpy as jnp
from jax.experimental import pallas as pl
from jax.experimental.pallas import tpu as pltpu

LANES = 128
SUBLANES = 8
MAX_TILE_ROWS = 1024  # 1024 x 128 x 4B = 512 KiB per f32 input tile


def _disc_loss_kernel(real_ref, fake_ref, out_ref, *, n_elems: int, tile_rows: int):
    """Accumulates (8,128) lane-dense partial sums of softplus(-real), softplus(fake)."""
    i = pl.program_id(0)

    @pl.when(i == 0)
    def _():
        out_ref[...] = jnp.zeros_like(out_ref)

    r = real_ref[...].astype(jnp.float32)
    f = fake_ref[...].astype(jnp.float32)

    # Validity mask: covers the padded tail of the last 1024-element chunk and
    # any garbage rows of a partially out-of-bounds final row-block.
    row = jax.lax.broadcasted_iota(jnp.int32, r.shape, 0)
    lane = jax.lax.broadcasted_iota(jnp.int32, r.shape, 1)
    elem = (i * tile_rows + row) * LANES + lane
    valid = elem < n_elems

    # Numerically stable softplus: softplus(x) = max(x, 0) + log1p(exp(-|x|))
    sp_r = jnp.maximum(-r, 0.0) + jnp.log1p(jnp.exp(-jnp.abs(r)))
    sp_f = jnp.maximum(f, 0.0) + jnp.log1p(jnp.exp(-jnp.abs(f)))
    sp_r = jnp.where(valid, sp_r, 0.0)
    sp_f = jnp.where(valid, sp_f, 0.0)

    # Vreg-wise reduce: (tile_rows,128) -> (tile_rows//8, 8, 128), sum leading
    # axis -> (8,128).  Pure elementwise VPU adds; no in-vreg reduce per step.
    rpb = tile_rows // SUBLANES
    sum_r = jnp.sum(sp_r.reshape(rpb, SUBLANES, LANES), axis=0)
    sum_f = jnp.sum(sp_f.reshape(rpb, SUBLANES, LANES), axis=0)

    out_ref[0:SUBLANES, :] += sum_r
    out_ref[SUBLANES:2 * SUBLANES, :] += sum_f


def _as_slab(x: jax.Array) -> jax.Array:
    """Reshape to a lane-dense (rows, 128) slab (rows % 8 == 0), original dtype.

    The reshape is free for contiguous inputs; a pad (single extra copy) is
    emitted only when numel is not a multiple of 8*128.  Pad values are
    irrelevant — the kernel masks them out by element index.
    """
    flat = x.reshape(-1)
    n = flat.shape[0]
    chunk = SUBLANES * LANES
    rem = n % chunk
    if rem:
        flat = jnp.pad(flat, (0, chunk - rem))
    return flat.reshape(-1, LANES)


@functools.partial(jax.jit, static_argnames=("weight", "max_tile_rows"))
def _disc_loss_core(real: jax.Array, fake: jax.Array, weight: float,
                    max_tile_rows: int = MAX_TILE_ROWS) -> jax.Array:
    if real.size != fake.size:
        raise ValueError(
            f"VanillaDiscLoss kernel requires real.size == fake.size, got "
            f"{real.size} vs {fake.size}")
    if max_tile_rows % SUBLANES != 0:
        raise ValueError("max_tile_rows must be a multiple of 8")
    n = real.size

    real2d = _as_slab(real)
    fake2d = _as_slab(fake)
    rows = real2d.shape[0]  # multiple of 8 by construction

    # Block rows: full row count for small inputs, else a big sublane-aligned
    # tile.  Both satisfy the (8,128) block constraint.
    tile_rows = rows if rows <= max_tile_rows else max_tile_rows
    grid = (pl.cdiv(rows, tile_rows),)

    in_bytes = (real2d.size * real2d.dtype.itemsize
                + fake2d.size * fake2d.dtype.itemsize)
    cost = pl.CostEstimate(
        flops=16 * n,            # ~8 VPU ops per element per stream
        transcendentals=4 * n,   # exp + log1p per element per stream
        bytes_accessed=in_bytes + 2 * SUBLANES * LANES * 4,
    )

    kernel = functools.partial(_disc_loss_kernel, n_elems=n, tile_rows=tile_rows)

    partials = pl.pallas_call(
        kernel,
        out_shape=jax.ShapeDtypeStruct((2 * SUBLANES, LANES), jnp.float32),
        grid_spec=pltpu.PrefetchScalarGridSpec(
            num_scalar_prefetch=0,
            grid=grid,
            in_specs=[
                pl.BlockSpec((tile_rows, LANES), lambda i: (i, 0)),
                pl.BlockSpec((tile_rows, LANES), lambda i: (i, 0)),
            ],
            out_specs=pl.BlockSpec((2 * SUBLANES, LANES), lambda i: (0, 0)),
        ),
        compiler_params=pltpu.CompilerParams(
            dimension_semantics=("arbitrary",),
        ),
        cost_estimate=cost,
    )(real2d, fake2d)

    inv_n = jnp.float32(1.0 / n)
    loss_real = jnp.sum(partials[:SUBLANES]) * inv_n
    loss_fake = jnp.sum(partials[SUBLANES:]) * inv_n
    d_loss = (loss_real + loss_fake) * jnp.float32(0.5) * jnp.float32(weight)
    # Shape (1,) in both branches (matches torch.zeros(1) of the gated branch).
    return d_loss.reshape(1)


class VanillaDiscLoss:
    """JAX/Pallas port of neurosis VanillaDiscLoss."""

    def __init__(self, weight: float = 1.0, start_step: int = 0):
        self.weight = float(weight)
        self.start_step = int(start_step)

    def __call__(self, real: jax.Array, fake: jax.Array, global_step: int = -1):
        if self.start_step > 0 and global_step < self.start_step:
            return jnp.zeros((1,), dtype=jnp.float32)
        return _disc_loss_core(real, fake, self.weight)


def _reference(real, fake, weight):
    loss_real = jnp.mean(jax.nn.softplus(-real.astype(jnp.float32)))
    loss_fake = jnp.mean(jax.nn.softplus(fake.astype(jnp.float32)))
    return (loss_real + loss_fake) * 0.5 * weight


if __name__ == "__main__":
    key = jax.random.PRNGKey(0)
    k1, k2, k3, k4, k5, k6 = jax.random.split(key, 6)

    # --- Case 1: patch-GAN style logit maps, NCHW, single-block path. ---
    real = jax.random.normal(k1, (2, 1, 16, 16), dtype=jnp.float32) * 2.0
    fake = jax.random.normal(k2, (2, 1, 16, 16), dtype=jnp.float32) * 2.0
    loss_fn = VanillaDiscLoss(weight=1.0, start_step=0)
    out = jax.block_until_ready(loss_fn(real, fake, global_step=10))
    ref = _reference(real, fake, 1.0)
    assert out.shape == (1,)
    assert jnp.allclose(out[0], ref, rtol=1e-5, atol=1e-6), (out, ref)

    # --- Case 2: ragged size (numel % 128 != 0) + multi-step accumulation. ---
    real_b = jax.random.normal(k3, (2, 1, 30, 30), dtype=jnp.float32) * 1.5
    fake_b = jax.random.normal(k4, (2, 1, 30, 30), dtype=jnp.float32) * 1.5
    out_b = jax.block_until_ready(
        _disc_loss_core(real_b, fake_b, 0.7, max_tile_rows=8))
    ref_b = _reference(real_b, fake_b, 0.7)
    assert jnp.allclose(out_b[0], ref_b, rtol=1e-5, atol=1e-6), (out_b, ref_b)

    # --- Case 3: partially out-of-bounds last row-block (rows % tile_rows != 0). ---
    real_c = jax.random.normal(k5, (2, 4, 16, 24), dtype=jnp.float32)   # 3072 elems -> 24 rows
    fake_c = jax.random.normal(k6, (2, 4, 16, 24), dtype=jnp.float32)
    out_c = jax.block_until_ready(
        _disc_loss_core(real_c, fake_c, 1.3, max_tile_rows=16))         # grid=2, 2nd block partial
    ref_c = _reference(real_c, fake_c, 1.3)
    assert jnp.allclose(out_c[0], ref_c, rtol=1e-5, atol=1e-6), (out_c, ref_c)

    # --- Case 4: bf16 inputs (in-kernel f32 cast path). ---
    real_h = real.astype(jnp.bfloat16)
    fake_h = fake.astype(jnp.bfloat16)
    out_h = jax.block_until_ready(VanillaDiscLoss(0.5)(real_h, fake_h))
    ref_h = _reference(real_h, fake_h, 0.5)
    assert jnp.allclose(out_h[0], ref_h, rtol=1e-5, atol=1e-6), (out_h, ref_h)

    # --- Case 5: gated (before start_step) returns zeros(1), matching torch. ---
    gated = VanillaDiscLoss(weight=1.0, start_step=100)(real, fake, global_step=5)
    gated = jax.block_until_ready(gated)
    assert gated.shape == (1,) and float(gated[0]) == 0.0

    print("KERNEL_OK")
</pallas_src>

<mosaic_0001>
module attributes {stable_mosaic.version = 11 : i64} {
  func.func @_disc_loss_kernel(%arg0: i32, %arg1: memref<8x128xf32, #tpu.memory_space<vmem>>, %arg2: memref<8x128xf32, #tpu.memory_space<vmem>>, %arg3: memref<16x128xf32, #tpu.memory_space<vmem>>) attributes {dimension_semantics = [#tpu.dimension_semantics<arbitrary>], iteration_bounds = array<i64: 1>, scalar_prefetch = 0 : i64, scratch_operands = 0 : i64, tpu.core_type = #tpu.core_type<tc>, window_params = [{transform_indices = @transform_0, window_bounds = array<i64: 8, 128>}, {transform_indices = @transform_1, window_bounds = array<i64: 8, 128>}, {pipeline_mode = #tpu.pipeline_mode<synchronous>, transform_indices = @transform_2, window_bounds = array<i64: 16, 128>}]} {
    %c0_i32 = arith.constant 0 : i32
    %0 = arith.cmpi eq, %arg0, %c0_i32 : i32
    %1 = arith.extui %0 : i1 to i32
    %c0_i32_0 = arith.constant 0 : i32
    %2 = arith.cmpi ne, %1, %c0_i32_0 : i32
    scf.if %2 {
      %cst_19 = arith.constant 0.000000e+00 : f32
      %47 = vector.broadcast %cst_19 : f32 to vector<16x128xf32>
      %c0_20 = arith.constant 0 : index
      %c0_21 = arith.constant 0 : index
      %48 = vector.load %arg3[%c0_20, %c0_21] : memref<16x128xf32, #tpu.memory_space<vmem>>, vector<16x128xf32>
      tpu.vector_store %arg3[%c0_20, %c0_21], %47 {strides = array<i32>} : memref<16x128xf32, #tpu.memory_space<vmem>>, vector<16x128xf32>,
    } else {
    }
    %c0 = arith.constant 0 : index
    %c0_1 = arith.constant 0 : index
    %3 = vector.load %arg1[%c0, %c0_1] : memref<8x128xf32, #tpu.memory_space<vmem>>, vector<8x128xf32>
    %c0_2 = arith.constant 0 : index
    %c0_3 = arith.constant 0 : index
    %4 = vector.load %arg2[%c0_2, %c0_3] : memref<8x128xf32, #tpu.memory_space<vmem>>, vector<8x128xf32>
    %5 = tpu.iota {dimensions = array<i32: 0>} : vector<8x128xi32>
    %6 = tpu.iota {dimensions = array<i32: 1>} : vector<8x128xi32>
    %c8_i32 = arith.constant 8 : i32
    %7 = arith.muli %arg0, %c8_i32 : i32
    %8 = vector.broadcast %7 : i32 to vector<8x128xi32>
    %9 = arith.addi %8, %5 : vector<8x128xi32>
    %c128_i32 = arith.constant 128 : i32
    %10 = vector.broadcast %c128_i32 : i32 to vector<8x128xi32>
    %11 = arith.muli %9, %10 : vector<8x128xi32>
    %12 = arith.addi %11, %6 : vector<8x128xi32>
    %c512_i32 = arith.constant 512 : i32
    %13 = vector.broadcast %c512_i32 : i32 to vector<8x128xi32>
    %14 = arith.cmpi slt, %12, %13 : vector<8x128xi32>
    %cst = arith.constant 0.000000e+00 : f32
    %15 = vector.broadcast %cst : f32 to vector<8x128xf32>
    %16 = arith.subf %15, %3 : vector<8x128xf32>
    %cst_4 = arith.constant 0.000000e+00 : f32
    %17 = vector.broadcast %cst_4 : f32 to vector<8x128xf32>
    %18 = arith.maximumf %16, %17 : vector<8x128xf32>
    %19 = math.absf %3 : vector<8x128xf32>
    %cst_5 = arith.constant 0.000000e+00 : f32
    %20 = vector.broadcast %cst_5 : f32 to vector<8x128xf32>
    %21 = arith.subf %20, %19 : vector<8x128xf32>
    %22 = math.exp %21 : vector<8x128xf32>
    %23 = math.log1p %22 : vector<8x128xf32>
    %24 = arith.addf %18, %23 : vector<8x128xf32>
    %cst_6 = arith.constant 0.000000e+00 : f32
    %25 = vector.broadcast %cst_6 : f32 to vector<8x128xf32>
    %26 = arith.maximumf %4, %25 : vector<8x128xf32>
    %27 = math.absf %4 : vector<8x128xf32>
    %cst_7 = arith.constant 0.000000e+00 : f32
    %28 = vector.broadcast %cst_7 : f32 to vector<8x128xf32>
    %29 = arith.subf %28, %27 : vector<8x128xf32>
    %30 = math.exp %29 : vector<8x128xf32>
    %31 = math.log1p %30 : vector<8x128xf32>
    %32 = arith.addf %26, %31 : vector<8x128xf32>
    %cst_8 = arith.constant 0.000000e+00 : f32
    %33 = vector.broadcast %cst_8 : f32 to vector<8x128xf32>
    %34 = arith.select %14, %24, %33 : vector<8x128xi1>, vector<8x128xf32>
    %cst_9 = arith.constant 0.000000e+00 : f32
    %35 = vector.broadcast %cst_9 : f32 to vector<8x128xf32>
    %36 = arith.select %14, %32, %35 : vector<8x128xi1>, vector<8x128xf32>
    %37 = vector.shape_cast %34 : vector<8x128xf32> to vector<1x8x128xf32>
    %cst_10 = arith.constant dense<0.000000e+00> : vector<8x128xf32>
    %38 = vector.multi_reduction <add>, %37, %cst_10 [0] : vector<1x8x128xf32> to vector<8x128xf32>
    %39 = vector.shape_cast %36 : vector<8x128xf32> to vector<1x8x128xf32>
    %cst_11 = arith.constant dense<0.000000e+00> : vector<8x128xf32>
    %40 = vector.multi_reduction <add>, %39, %cst_11 [0] : vector<1x8x128xf32> to vector<8x128xf32>
    %c0_12 = arith.constant 0 : index
    %c0_13 = arith.constant 0 : index
    %41 = vector.load %arg3[%c0_12, %c0_13] : memref<16x128xf32, #tpu.memory_space<vmem>>, vector<8x128xf32>
    %42 = arith.addf %41, %38 : vector<8x128xf32>
    %c0_14 = arith.constant 0 : index
    %c0_15 = arith.constant 0 : index
    %43 = vector.load %arg3[%c0_14, %c0_15] : memref<16x128xf32, #tpu.memory_space<vmem>>, vector<8x128xf32>
    tpu.vector_store %arg3[%c0_14, %c0_15], %42 {strides = array<i32>} : memref<16x128xf32, #tpu.memory_space<vmem>>, vector<8x128xf32>,
    %c8 = arith.constant 8 : index
    %c0_16 = arith.constant 0 : index
    %44 = vector.load %arg3[%c8, %c0_16] : memref<16x128xf32, #tpu.memory_space<vmem>>, vector<8x128xf32>
    %45 = arith.addf %44, %40 : vector<8x128xf32>
    %c8_17 = arith.constant 8 : index
    %c0_18 = arith.constant 0 : index
    %46 = vector.load %arg3[%c8_17, %c0_18] : memref<16x128xf32, #tpu.memory_space<vmem>>, vector<8x128xf32>
    tpu.vector_store %arg3[%c8_17, %c0_18], %45 {strides = array<i32>} : memref<16x128xf32, #tpu.memory_space<vmem>>, vector<8x128xf32>,
    return
  }
  func.func @transform_0(%arg0: i32) -> (i32, i32) {
    %c0_i32 = arith.constant 0 : i32
    %c0_i32_0 = arith.constant 0 : i32
    return %arg0, %c0_i32 : i32, i32
  }
  func.func @transform_1(%arg0: i32) -> (i32, i32) {
    %c0_i32 = arith.constant 0 : i32
    %c0_i32_0 = arith.constant 0 : i32
    return %arg0, %c0_i32 : i32, i32
  }
  func.func @transform_2(%arg0: i32) -> (i32, i32) {
    %c0_i32 = arith.constant 0 : i32
    %c0_i32_0 = arith.constant 0 : i32
    %c0_i32_1 = arith.constant 0 : i32
    return %c0_i32, %c0_i32_0 : i32, i32
  }
}

</mosaic_0001>

<llo_original>
// kernel: _disc_loss_core.1
$region0: #{_disc_loss_core.1}
  #allocation0 [shape = 'u32[]', space=smem, size = 0x4, offset = 0x4, fixed_abs, tag = 'smem constant byte address 0x4 - core index']
  #allocation1 [shape = 'u32[144,128]{1,0:T(1,128)}', space=vmem, size = 0x12000, scoped, tag = 'internal scratch']
  %s0 = inlined_call_operand.vmem [shape: f32[8,128], index: 0, kind: input, shape index: {}]
  %s1 = inlined_call_operand.vmem [shape: f32[8,128], index: 1, kind: input, shape index: {}]
  %s2 = inlined_call_operand.vmem [shape: f32[16,128], index: 2, kind: output, shape index: {}]
  %s3 = sld [smem:[#allocation0]]
  $region22: #{_disc_loss_core.1} parent=0
    _
  %s5 = ssub.s32 1, %s3
  %s6 = scalar_select 0, %s5, %s3
  // Predicated region
  $region2: #{_disc_loss_core.1} parent=0 // pred_check
    _
  $region3: #{_disc_loss_core.1} parent=0 // pred_check_branch
    %8 = sbr.rel (0) target = $region5
  $region4: #{_disc_loss_core.1} parent=0 // pred_region
    _
  $region5: #{_disc_loss_core.1} parent=0 // pred_fallthru
    _
  // Predicated region
  $region6: #{_disc_loss_core.1} parent=0 // pred_check
    _
  $region7: #{_disc_loss_core.1} parent=0 // pred_check_branch
    %10 = sbr.rel (0) target = $region9
  $region8: #{_disc_loss_core.1} parent=0 // pred_region
    _
  $region9: #{_disc_loss_core.1} parent=0 // pred_fallthru
    _
  %p11 = scmp.eq.s32.totalorder 0, 0
  // Predicated region
  $region10: #{_disc_loss_core.1} parent=0 // pred_check
    %p12 = pneg %p11
  $region11: #{_disc_loss_core.1} parent=0 // pred_check_branch
    %14 = sbr.rel (%p12) target = $region13
  $region12: #{_disc_loss_core.1} parent=0 // pred_region
    %15 = vst [vmem:[%s2] sm:$0xff] 0.0
    %16 = vst [vmem:[%s2 + $0x8] sm:$0xff] 0.0
  $region13: #{_disc_loss_core.1} parent=0 // pred_fallthru
    _
  %v17 = vld [vmem:[%s0] sm:$0xff]
  %v18 = vld [vmem:[%s1] sm:$0xff]
  %v19 = vlaneseq
  %v20 = vshrl.u32 %v19, 7
  %v21 = vlaneseq
  %v22 = vand.u32 %v21, 127
  %s23 = smul.u32 0, 8
  %v24 = vstv %s23
  %v25 = vadd.s32 %v24, %v20
  %v26 = vmul.u32 %v25, 128
  %v27 = vadd.s32 %v26, %v22
  %vm28 = vcmp.lt.s32.totalorder %v27, 512
  %v29 = vsub.f32 0.0, %v17
  %v30 = vmax.f32 %v29, 0.0
  %v31 = vand.u32 2147483647, %v17
  %v32 = vsub.f32 0.0, %v31
  %v33 = vmul.f32 %v32, 1.442695
  %v34 = vpow.pop %v33
  %v35 = vadd.f32 %v34, 1.0
  %v36 = vlog2.pop %v35
  %v37 = vmul.f32 %v36, 0.6931472
  %v38 = vmul.f32 -0.5, %v34
  %v39 = vadd.f32 %v38, 1.0
  %v40 = vmul.f32 %v39, %v34
  %v41 = vand.u32 2147483647, %v34
  %vm42 = vcmp.lt.f32.partialorder %v41, 0.0004427343
  %v43 = vsel %vm42, %v40, %v37
  %v44 = vadd.f32 %v30, %v43
  %v45 = vmax.f32 %v18, 0.0
  %v46 = vand.u32 2147483647, %v18
  %v47 = vsub.f32 0.0, %v46
  %v48 = vmul.f32 %v47, 1.442695
  %v49 = vpow.pop %v48
  %v50 = vadd.f32 %v49, 1.0
  %v51 = vlog2.pop %v50
  %v52 = vmul.f32 %v51, 0.6931472
  %v53 = vmul.f32 -0.5, %v49
  %v54 = vadd.f32 %v53, 1.0
  %v55 = vmul.f32 %v54, %v49
  %v56 = vand.u32 2147483647, %v49
  %vm57 = vcmp.lt.f32.partialorder %v56, 0.0004427343
  %v58 = vsel %vm57, %v55, %v52
  %v59 = vadd.f32 %v45, %v58
  %v60 = vsel %vm28, %v44, 0.0
  %v61 = vsel %vm28, %v59, 0.0
  %v62 = vadd.f32 %v60, 0.0
  %v63 = vadd.f32 %v61, 0.0
  %v64 = vld [vmem:[%s2] sm:$0xff]
  %v65 = vadd.f32 %v64, %v62
  %66 = vst [vmem:[%s2] sm:$0xff] %v65
  %v67 = vld [vmem:[%s2 + $0x8] sm:$0xff]
  %v68 = vadd.f32 %v67, %v63
  %69 = vst [vmem:[%s2 + $0x8] sm:$0xff] %v68
  // Predicated region
  $region14: #{_disc_loss_core.1} parent=0 // pred_check
    _
  $region15: #{_disc_loss_core.1} parent=0 // pred_check_branch
    %71 = sbr.rel (0) target = $region17
  $region16: #{_disc_loss_core.1} parent=0 // pred_region
    _
  $region17: #{_disc_loss_core.1} parent=0 // pred_fallthru
    _
  // Predicated region
  $region18: #{_disc_loss_core.1} parent=0 // pred_check
    _
  $region19: #{_disc_loss_core.1} parent=0 // pred_check_branch
    %73 = sbr.rel (0) target = $region21
  $region20: #{_disc_loss_core.1} parent=0 // pred_region
    _
  $region21: #{_disc_loss_core.1} parent=0 // pred_fallthru
    _

</llo_original>
